<compile_context>
chip_gen: v6e
topology: v6e:2x2x1
jax: 0.10.0
libtpu: 0.0.40
codegen_flags: <defaults>
</compile_context>

<pallas_src>
import jax
import jax.numpy as jnp
from jax.experimental import pallas as pl
from jax.experimental.pallas import tpu as pltpu

# ---- model hyperparameters (small, consistent with the module) ----
VOCAB_SIZE = 256
EMBED_DIM = 32
CONTEXT_SIZE = 4
HIDDEN = 128
IN_FEATURES = CONTEXT_SIZE * EMBED_DIM  # 128

BATCH_TILE = 128  # multiple of 128 (v5e MXU width, 8-sublane aligned)


def ngram_mlp_kernel(x_ref, w1t_ref, b1_ref, w2t_ref, b2_ref, out_ref):
    # x_ref: (Bt, C*D) already-gathered, flattened embeddings.
    # w1t_ref: (C*D, HIDDEN), w2t_ref: (HIDDEN, VOCAB) -- (K, N) layout,
    # so the MXU is fed directly with no in-kernel transpose.
    x = x_ref[...]
    h = jnp.dot(x, w1t_ref[...], preferred_element_type=jnp.float32)       # (Bt, H)
    h = jnp.maximum(h + b1_ref[...], 0.0)
    logits = jnp.dot(h, w2t_ref[...], preferred_element_type=jnp.float32)  # (Bt, V)
    logits = logits + b2_ref[...]

    # log_softmax along the vocab axis (numerically stable, all f32).
    m = jnp.max(logits, axis=1, keepdims=True)
    z = logits - m
    lse = jnp.log(jnp.sum(jnp.exp(z), axis=1, keepdims=True))
    out_ref[...] = z - lse


@jax.jit
def ngram_forward(indices, emb, w1, b1, w2, b2):
    """Batched NGramLanguageModeler forward.

    indices: (B, CONTEXT_SIZE) int32
    emb:     (VOCAB_SIZE, EMBED_DIM) f32
    w1, b1:  PyTorch layout (HIDDEN, C*D), (HIDDEN,)
    w2, b2:  PyTorch layout (VOCAB_SIZE, HIDDEN), (VOCAB_SIZE,)
    returns: (B, VOCAB_SIZE) log-probabilities
    """
    B = indices.shape[0]

    # Embedding gather + flatten done by XLA (overlaps with kernel weight DMA).
    x = jnp.take(emb, indices, axis=0).reshape(B, IN_FEATURES)

    # Pad the batch up to a tile multiple so every output store is a full,
    # unmasked (>=8, 256) tile.
    n_tiles = pl.cdiv(B, BATCH_TILE)
    Bp = n_tiles * BATCH_TILE
    if Bp != B:
        x = jnp.pad(x, ((0, Bp - B), (0, 0)))

    # Pre-transpose weights once in the wrapper -> (K, N) MXU-ready layout.
    w1t = w1.T                       # (IN_FEATURES, HIDDEN)
    w2t = w2.T                       # (HIDDEN, VOCAB_SIZE)
    b1r = b1.reshape(1, HIDDEN)
    b2r = b2.reshape(1, VOCAB_SIZE)

    cost = pl.CostEstimate(
        flops=2 * Bp * (IN_FEATURES * HIDDEN + HIDDEN * VOCAB_SIZE),
        transcendentals=Bp * (VOCAB_SIZE + 1),
        bytes_accessed=4 * (Bp * IN_FEATURES + Bp * VOCAB_SIZE
                            + IN_FEATURES * HIDDEN + HIDDEN * VOCAB_SIZE
                            + HIDDEN + VOCAB_SIZE),
    )

    out = pl.pallas_call(
        ngram_mlp_kernel,
        out_shape=jax.ShapeDtypeStruct((Bp, VOCAB_SIZE), jnp.float32),
        grid_spec=pltpu.PrefetchScalarGridSpec(
            num_scalar_prefetch=0,
            grid=(n_tiles,),
            in_specs=[
                pl.BlockSpec((BATCH_TILE, IN_FEATURES), lambda i: (i, 0)),  # x tile
                pl.BlockSpec((IN_FEATURES, HIDDEN), lambda i: (0, 0)),      # W1^T (resident)
                pl.BlockSpec((1, HIDDEN), lambda i: (0, 0)),                # b1   (resident)
                pl.BlockSpec((HIDDEN, VOCAB_SIZE), lambda i: (0, 0)),       # W2^T (resident)
                pl.BlockSpec((1, VOCAB_SIZE), lambda i: (0, 0)),            # b2   (resident)
            ],
            out_specs=pl.BlockSpec((BATCH_TILE, VOCAB_SIZE), lambda i: (i, 0)),
        ),
        compiler_params=pltpu.CompilerParams(
            dimension_semantics=("parallel",),
        ),
        cost_estimate=cost,
    )(x, w1t, b1r, w2t, b2r)

    return out[:B]


def reference_forward(indices, emb, w1, b1, w2, b2):
    x = jnp.take(emb, indices, axis=0).reshape(indices.shape[0], -1)
    h = jnp.maximum(x @ w1.T + b1.reshape(1, -1), 0.0)
    logits = h @ w2.T + b2.reshape(1, -1)
    return jax.nn.log_softmax(logits, axis=1)


if __name__ == "__main__":
    key = jax.random.PRNGKey(0)
    k_emb, k_w1, k_b1, k_w2, k_b2, k_idx = jax.random.split(key, 6)

    # deterministic parameter init (shapes follow the PyTorch module)
    emb = jax.random.normal(k_emb, (VOCAB_SIZE, EMBED_DIM), jnp.float32)
    w1 = jax.random.normal(k_w1, (HIDDEN, IN_FEATURES), jnp.float32) * 0.05
    b1 = jax.random.normal(k_b1, (HIDDEN,), jnp.float32) * 0.05
    w2 = jax.random.normal(k_w2, (VOCAB_SIZE, HIDDEN), jnp.float32) * 0.05
    b2 = jax.random.normal(k_b2, (VOCAB_SIZE,), jnp.float32) * 0.05

    # Batched contexts (batching amortizes weight DMA and fills the MXU).
    B = 256
    indices = jax.random.randint(k_idx, (B, CONTEXT_SIZE), 0, VOCAB_SIZE, jnp.int32)

    log_probs = jax.block_until_ready(ngram_forward(indices, emb, w1, b1, w2, b2))
    ref = reference_forward(indices, emb, w1, b1, w2, b2)
    assert log_probs.shape == (B, VOCAB_SIZE)
    assert jnp.allclose(log_probs, ref, atol=1e-3, rtol=1e-3), (
        float(jnp.max(jnp.abs(log_probs - ref)))
    )

    # Single-context call (original module semantics: (1, V) log-probs);
    # exercises the batch-padding path.
    lp1 = jax.block_until_ready(ngram_forward(indices[:1], emb, w1, b1, w2, b2))
    assert lp1.shape == (1, VOCAB_SIZE)
    assert jnp.allclose(lp1, ref[:1], atol=1e-3, rtol=1e-3), (
        float(jnp.max(jnp.abs(lp1 - ref[:1])))
    )

    print("KERNEL_OK")
</pallas_src>

<mosaic_0001>
module attributes {stable_mosaic.version = 11 : i64} {
  func.func @ngram_mlp_kernel(%arg0: i32, %arg1: memref<128x128xf32, #tpu.memory_space<vmem>>, %arg2: memref<128x128xf32, #tpu.memory_space<vmem>>, %arg3: memref<1x128xf32, #tpu.memory_space<vmem>>, %arg4: memref<128x256xf32, #tpu.memory_space<vmem>>, %arg5: memref<1x256xf32, #tpu.memory_space<vmem>>, %arg6: memref<128x256xf32, #tpu.memory_space<vmem>>) attributes {dimension_semantics = [#tpu.dimension_semantics<parallel>], iteration_bounds = array<i64: 2>, scalar_prefetch = 0 : i64, scratch_operands = 0 : i64, tpu.core_type = #tpu.core_type<tc>, window_params = [{transform_indices = @transform_0, window_bounds = array<i64: 128, 128>}, {pipeline_mode = #tpu.pipeline_mode<synchronous>, transform_indices = @transform_1, window_bounds = array<i64: 128, 128>}, {pipeline_mode = #tpu.pipeline_mode<synchronous>, transform_indices = @transform_2, window_bounds = array<i64: 1, 128>}, {pipeline_mode = #tpu.pipeline_mode<synchronous>, transform_indices = @transform_3, window_bounds = array<i64: 128, 256>}, {pipeline_mode = #tpu.pipeline_mode<synchronous>, transform_indices = @transform_4, window_bounds = array<i64: 1, 256>}, {transform_indices = @transform_5, window_bounds = array<i64: 128, 256>}]} {
    %c0 = arith.constant 0 : index
    %c0_0 = arith.constant 0 : index
    %0 = vector.load %arg1[%c0, %c0_0] : memref<128x128xf32, #tpu.memory_space<vmem>>, vector<128x128xf32>
    %c0_1 = arith.constant 0 : index
    %c0_2 = arith.constant 0 : index
    %1 = vector.load %arg2[%c0_1, %c0_2] : memref<128x128xf32, #tpu.memory_space<vmem>>, vector<128x128xf32>
    %cst = arith.constant dense<0.000000e+00> : vector<128x128xf32>
    %2 = tpu.matmul %0, %1, %cst {dimension_numbers = #tpu.dot_dimension_numbers<[1], [0], [0], [1], [0, 0, 1, 1], [], []>} : vector<128x128xf32>, vector<128x128xf32>, vector<128x128xf32> -> vector<128x128xf32>
    %c0_3 = arith.constant 0 : index
    %c0_4 = arith.constant 0 : index
    %3 = vector.load %arg3[%c0_3, %c0_4] : memref<1x128xf32, #tpu.memory_space<vmem>>, vector<1x128xf32>
    %4 = vector.broadcast %3 : vector<1x128xf32> to vector<128x128xf32>
    %5 = arith.addf %2, %4 : vector<128x128xf32>
    %cst_5 = arith.constant 0.000000e+00 : f32
    %6 = vector.broadcast %cst_5 : f32 to vector<128x128xf32>
    %7 = arith.maximumf %5, %6 : vector<128x128xf32>
    %c0_6 = arith.constant 0 : index
    %c0_7 = arith.constant 0 : index
    %8 = vector.load %arg4[%c0_6, %c0_7] : memref<128x256xf32, #tpu.memory_space<vmem>>, vector<128x256xf32>
    %cst_8 = arith.constant dense<0.000000e+00> : vector<128x256xf32>
    %9 = tpu.matmul %7, %8, %cst_8 {dimension_numbers = #tpu.dot_dimension_numbers<[1], [0], [0], [1], [0, 0, 1, 1], [], []>} : vector<128x128xf32>, vector<128x256xf32>, vector<128x256xf32> -> vector<128x256xf32>
    %c0_9 = arith.constant 0 : index
    %c0_10 = arith.constant 0 : index
    %10 = vector.load %arg5[%c0_9, %c0_10] : memref<1x256xf32, #tpu.memory_space<vmem>>, vector<1x256xf32>
    %11 = vector.broadcast %10 : vector<1x256xf32> to vector<128x256xf32>
    %12 = arith.addf %9, %11 : vector<128x256xf32>
    %cst_11 = arith.constant dense<0xFF800000> : vector<128xf32>
    %13 = vector.multi_reduction <maximumf>, %12, %cst_11 [1] : vector<128x256xf32> to vector<128xf32>
    %14 = vector.shape_cast %13 : vector<128xf32> to vector<128x1xf32>
    %15 = vector.broadcast %14 : vector<128x1xf32> to vector<128x256xf32>
    %16 = arith.subf %12, %15 : vector<128x256xf32>
    %17 = math.exp %16 : vector<128x256xf32>
    %cst_12 = arith.constant dense<0.000000e+00> : vector<128xf32>
    %18 = vector.multi_reduction <add>, %17, %cst_12 [1] : vector<128x256xf32> to vector<128xf32>
    %19 = vector.shape_cast %18 : vector<128xf32> to vector<128x1xf32>
    %20 = math.log %19 : vector<128x1xf32>
    %21 = vector.broadcast %20 : vector<128x1xf32> to vector<128x256xf32>
    %22 = arith.subf %16, %21 : vector<128x256xf32>
    %c0_13 = arith.constant 0 : index
    %c0_14 = arith.constant 0 : index
    %23 = vector.load %arg6[%c0_13, %c0_14] : memref<128x256xf32, #tpu.memory_space<vmem>>, vector<128x256xf32>
    tpu.vector_store %arg6[%c0_13, %c0_14], %22 {strides = array<i32>} : memref<128x256xf32, #tpu.memory_space<vmem>>, vector<128x256xf32>,
    return
  }
  func.func @transform_0(%arg0: i32) -> (i32, i32) {
    %c0_i32 = arith.constant 0 : i32
    %c0_i32_0 = arith.constant 0 : i32
    return %arg0, %c0_i32 : i32, i32
  }
  func.func @transform_1(%arg0: i32) -> (i32, i32) {
    %c0_i32 = arith.constant 0 : i32
    %c0_i32_0 = arith.constant 0 : i32
    %c0_i32_1 = arith.constant 0 : i32
    return %c0_i32, %c0_i32_0 : i32, i32
  }
  func.func @transform_2(%arg0: i32) -> (i32, i32) {
    %c0_i32 = arith.constant 0 : i32
    %c0_i32_0 = arith.constant 0 : i32
    %c0_i32_1 = arith.constant 0 : i32
    return %c0_i32, %c0_i32_0 : i32, i32
  }
  func.func @transform_3(%arg0: i32) -> (i32, i32) {
    %c0_i32 = arith.constant 0 : i32
    %c0_i32_0 = arith.constant 0 : i32
    %c0_i32_1 = arith.constant 0 : i32
    return %c0_i32, %c0_i32_0 : i32, i32
  }
  func.func @transform_4(%arg0: i32) -> (i32, i32) {
    %c0_i32 = arith.constant 0 : i32
    %c0_i32_0 = arith.constant 0 : i32
    %c0_i32_1 = arith.constant 0 : i32
    return %c0_i32, %c0_i32_0 : i32, i32
  }
  func.func @transform_5(%arg0: i32) -> (i32, i32) {
    %c0_i32 = arith.constant 0 : i32
    %c0_i32_0 = arith.constant 0 : i32
    return %arg0, %c0_i32 : i32, i32
  }
}

</mosaic_0001>

<llo_original>
// kernel: ngram_forward.1
$region0: #{ngram_forward.1}
  #allocation0 [shape = 'u32[]', space=smem, size = 0x4, offset = 0x4, fixed_abs, tag = 'smem constant byte address 0x4 - core index']
  #allocation1 [shape = 'u32[144,128]{1,0:T(1,128)}', space=vmem, size = 0x12000, scoped, tag = 'internal scratch']
  %s0 = inlined_call_operand.vmem [shape: f32[256,128], index: 0, kind: input, shape index: {}]
  %s1 = inlined_call_operand.vmem [shape: f32[128,128], index: 1, kind: input, shape index: {}]
  %s2 = inlined_call_operand.vmem [shape: f32[1,128], index: 2, kind: input, shape index: {}]
  %s3 = inlined_call_operand.vmem [shape: f32[128,256], index: 3, kind: input, shape index: {}]
  %s4 = inlined_call_operand.vmem [shape: f32[1,256], index: 4, kind: input, shape index: {}]
  %s5 = inlined_call_operand.hbm [shape: f32[256,256], index: 5, kind: output, shape index: {}]
  %s6 = sld [smem:[#allocation0]]
  $region53: #{ngram_forward.1} parent=0
    _
  %s8 = ssub.s32 1, %s6
  %s9 = scalar_select 0, %s8, %s6
  $region1: #{ngram_forward.1} parent=0
    #allocation2 [shape = 'u8[262144]{0}', space=vmem, size = 0x40000, scoped, tag = 'output window, operand 0']
    #allocation3 [shape = 's32[2]{0}', space=sflag, size = 0x8, scoped, tag = 'scoped memory for ngram_forward.1']
    %10 = vsyncpa [#allocation3], 0
    %s11 = scalar_lea.sflag [#allocation3], 1
    %12 = vsyncpa %s11, 0
    loop: start=0, step=1, limit=4
    $region2: #{ngram_forward.1} parent=1 // loop_pre_header
      _
    $region3: #{ngram_forward.1} parent=1 // loop_header
      %s14 = sphi 0, %s18
      %p15 = scmp.ge.s32.totalorder %s14, 4
      %s24 = sphi 0, %s26
      %s27 = sphi 0, %s24
      %s28 = sphi 0, %s27
      %s44 = sphi 0, %s28
      %s48 = sphi 0, %s48
      %s50 = sphi 0, %s48
      %s51 = sphi 0, %s50
      %s65 = sphi 0, %s51
      %s69 = sphi 0, %s69
      %s71 = sphi 0, %s69
      %s72 = sphi 0, %s71
      %s86 = sphi 0, %s72
      %s90 = sphi 0, %s90
      %s92 = sphi 0, %s90
      %s93 = sphi 0, %s92
      %s107 = sphi 0, %s93
      %s111 = sphi 0, %s111
      %s113 = sphi 0, %s111
      %s114 = sphi 0, %s113
      %s128 = sphi 0, %s114
      %s134 = sphi 0, %s136
      %s137 = sphi 0, %s134
      %s138 = sphi 0, %s137
      %s154 = sphi 0, %s138
    $region4: #{ngram_forward.1} parent=1 // loop_header_branch
      %17 = sbr.rel (%p15) target = $region8
    $region5: #{ngram_forward.1} parent=1 // loop_body
      %s19 = ssub.s32 %s14, 1
      %s20 = ssub.s32 %s14, 2
      %s21 = sadd.s32 %s14, 1
      %s22 = ssub.s32 %s14, %s21
      %p23 = scmp.eq.s32.totalorder %s22, 0
      %s25 = sadd.s32 %s24, 1
      %s26 = scalar_select %p23, %s24, %s25
      %p29 = pneg %p23
      %p30 = scmp.eq.s32.totalorder %s14, 1
      %p31 = por %p29, %p30
      %p32 = scmp.ne.s32.totalorder %s24, %s27
      %p33 = scmp.eq.s32.totalorder %s14, 0
      %p34 = por %p32, %p33
      %p35 = scmp.ne.s32.totalorder %s24, %s27
      %p36 = scmp.eq.s32.totalorder %s19, 1
      %p37 = por %p35, %p36
      %p38 = scmp.ne.s32.totalorder %s27, %s28
      %p39 = scmp.eq.s32.totalorder %s19, 0
      %p40 = por %p38, %p39
      %p41 = scmp.ne.s32.totalorder %s27, %s28
      %p42 = scmp.eq.s32.totalorder %s20, 1
      %p43 = por %p41, %p42
      %p45 = scmp.ne.s32.totalorder %s28, %s44
      %p46 = scmp.eq.s32.totalorder %s20, 0
      %p47 = por %p45, %p46
      %s49 = sadd.s32 %s48, 1
      %p52 = scmp.eq.s32.totalorder %s14, 1
      %p53 = scmp.ne.s32.totalorder %s48, %s50
      %p54 = scmp.eq.s32.totalorder %s14, 0
      %p55 = por %p53, %p54
      %p56 = scmp.ne.s32.totalorder %s48, %s50
      %p57 = scmp.eq.s32.totalorder %s19, 1
      %p58 = por %p56, %p57
      %p59 = scmp.ne.s32.totalorder %s50, %s51
      %p60 = scmp.eq.s32.totalorder %s19, 0
      %p61 = por %p59, %p60
      %p62 = scmp.ne.s32.totalorder %s50, %s51
      %p63 = scmp.eq.s32.totalorder %s20, 1
      %p64 = por %p62, %p63
      %p66 = scmp.ne.s32.totalorder %s51, %s65
      %p67 = scmp.eq.s32.totalorder %s20, 0
      %p68 = por %p66, %p67
      %s70 = sadd.s32 %s69, 1
      %p73 = scmp.eq.s32.totalorder %s14, 1
      %p74 = scmp.ne.s32.totalorder %s69, %s71
      %p75 = scmp.eq.s32.totalorder %s14, 0
      %p76 = por %p74, %p75
      %p77 = scmp.ne.s32.totalorder %s69, %s71
      %p78 = scmp.eq.s32.totalorder %s19, 1
      %p79 = por %p77, %p78
      %p80 = scmp.ne.s32.totalorder %s71, %s72
      %p81 = scmp.eq.s32.totalorder %s19, 0
      %p82 = por %p80, %p81
      %p83 = scmp.ne.s32.totalorder %s71, %s72
      %p84 = scmp.eq.s32.totalorder %s20, 1
      %p85 = por %p83, %p84
      %p87 = scmp.ne.s32.totalorder %s72, %s86
      %p88 = scmp.eq.s32.totalorder %s20, 0
      %p89 = por %p87, %p88
      %s91 = sadd.s32 %s90, 1
      %p94 = scmp.eq.s32.totalorder %s14, 1
      %p95 = scmp.ne.s32.totalorder %s90, %s92
      %p96 = scmp.eq.s32.totalorder %s14, 0
      %p97 = por %p95, %p96
      %p98 = scmp.ne.s32.totalorder %s90, %s92
      %p99 = scmp.eq.s32.totalorder %s19, 1
      %p100 = por %p98, %p99
      %p101 = scmp.ne.s32.totalorder %s92, %s93
      %p102 = scmp.eq.s32.totalorder %s19, 0
      %p103 = por %p101, %p102
      %p104 = scmp.ne.s32.totalorder %s92, %s93
      %p105 = scmp.eq.s32.totalorder %s20, 1
      %p106 = por %p104, %p105
      %p108 = scmp.ne.s32.totalorder %s93, %s107
      %p109 = scmp.eq.s32.totalorder %s20, 0
      %p110 = por %p108, %p109
      %s112 = sadd.s32 %s111, 1
      %p115 = scmp.eq.s32.totalorder %s14, 1
      %p116 = scmp.ne.s32.totalorder %s111, %s113
      %p117 = scmp.eq.s32.totalorder %s14, 0
      %p118 = por %p116, %p117
      %p119 = scmp.ne.s32.totalorder %s111, %s113
      %p120 = scmp.eq.s32.totalorder %s19, 1
      %p121 = por %p119, %p120
      %p122 = scmp.ne.s32.totalorder %s113, %s114
      %p123 = scmp.eq.s32.totalorder %s19, 0
      %p124 = por %p122, %p123
      %p125 = scmp.ne.s32.totalorder %s113, %s114
      %p126 = scmp.eq.s32.totalorder %s20, 1
      %p127 = por %p125, %p126
      %p129 = scmp.ne.s32.totalorder %s114, %s128
      %p130 = scmp.eq.s32.totalorder %s20, 0
      %p131 = por %p129, %p130
      %s132 = ssub.s32 %s14, %s21
      %p133 = scmp.eq.s32.totalorder %s132, 0
      %s135 = sadd.s32 %s134, 1
      %s136 = scalar_select %p133, %s134, %s135
      %p139 = pneg %p133
      %p140 = scmp.eq.s32.totalorder %s14, 1
      %p141 = por %p139, %p140
      %p142 = scmp.ne.s32.totalorder %s134, %s137
      %p143 = scmp.eq.s32.totalorder %s14, 0
      %p144 = por %p142, %p143
      %p145 = scmp.ne.s32.totalorder %s134, %s137
      %p146 = scmp.eq.s32.totalorder %s19, 1
      %p147 = por %p145, %p146
      %p148 = scmp.ne.s32.totalorder %s137, %s138
      %p149 = scmp.eq.s32.totalorder %s19, 0
      %p150 = por %p148, %p149
      %p151 = scmp.ne.s32.totalorder %s137, %s138
      %p152 = scmp.eq.s32.totalorder %s20, 1
      %p153 = por %p151, %p152
      %p155 = scmp.ne.s32.totalorder %s138, %s154
      %p156 = scmp.eq.s32.totalorder %s20, 0
      %p157 = por %p155, %p156
      %p158 = scmp.le.s32.totalorder 1, %s14
      %p159 = scmp.lt.s32.totalorder %s14, 3
      %p160 = pnand %p158, %p159
      %p161 = pneg %p160
      // Predicated region
      $region9: #{ngram_forward.1} parent=5 // pred_check
        _
      $region10: #{ngram_forward.1} parent=5 // pred_check_branch
        %163 = sbr.rel (%p160) target = $region12
      $region11: #{ngram_forward.1} parent=5 // pred_region
        %s164 = ssub.s32 %s14, 1
        // Predicated region
        $region13: #{ngram_forward.1} parent=11 // pred_check
          %p165 = pneg %p61
        $region14: #{ngram_forward.1} parent=11 // pred_check_branch
          %167 = sbr.rel (%p165) target = $region16
        $region15: #{ngram_forward.1} parent=11 // pred_region
          _
        $region16: #{ngram_forward.1} parent=11 // pred_fallthru
          _
        // Predicated region
        $region17: #{ngram_forward.1} parent=11 // pred_check
          %p168 = pneg %p82
        $region18: #{ngram_forward.1} parent=11 // pred_check_branch
          %170 = sbr.rel (%p168) target = $region20
        $region19: #{ngram_forward.1} parent=11 // pred_region
          _
        $region20: #{ngram_forward.1} parent=11 // pred_fallthru
          _
        // Predicated region
        $region21: #{ngram_forward.1} parent=11 // pred_check
          %p171 = pneg %p103
        $region22: #{ngram_forward.1} parent=11 // pred_check_branch
          %173 = sbr.rel (%p171) target = $region24
        $region23: #{ngram_forward.1} parent=11 // pred_region
          _
        $region24: #{ngram_forward.1} parent=11 // pred_fallthru
          _
        // Predicated region
        $region25: #{ngram_forward.1} parent=11 // pred_check
          %p174 = pneg %p124
        $region26: #{ngram_forward.1} parent=11 // pred_check_branch
          %176 = sbr.rel (%p174) target = $region28
        $region27: #{ngram_forward.1} parent=11 // pred_region
          _
        $region28: #{ngram_forward.1} parent=11 // pred_fallthru
          _
      $region12: #{ngram_forward.1} parent=5 // pred_fallthru
        _
      %p177 = scmp.lt.s32.totalorder %s14, 2
      // Predicated region
      $region29: #{ngram_forward.1} parent=5 // pred_check
        %p178 = pneg %p177
      $region30: #{ngram_forward.1} parent=5 // pred_check_branch
        %180 = sbr.rel (%p178) target = $region32
      $region31: #{ngram_forward.1} parent=5 // pred_region
        // Predicated region
        $region33: #{ngram_forward.1} parent=31 // pred_check
          %p181 = pneg %p34
        $region34: #{ngram_forward.1} parent=31 // pred_check_branch
          %183 = sbr.rel (%p181) target = $region36
        $region35: #{ngram_forward.1} parent=31 // pred_region
          %s184 = smul.u32 16, %s14
          %p185 = scmp.lt.s32.totalorder %s184, 31
          %s186 = scalar_select %p185, %s184, 31
          %s187 = smul.addr %s186, 8
          %s188 = scalar_lea.vmem %s0, %s187
          %s189 = smul.u32 16, %s14
        $region36: #{ngram_forward.1} parent=31 // pred_fallthru
          _
      $region32: #{ngram_forward.1} parent=5 // pred_fallthru
        _
      %p190 = scmp.le.s32.totalorder 1, %s14
      %p191 = scmp.lt.s32.totalorder %s14, 3
      %p192 = pnand %p190, %p191
      %p193 = pneg %p192
      // Predicated region
      $region37: #{ngram_forward.1} parent=5 // pred_check
        _
      $region38: #{ngram_forward.1} parent=5 // pred_check_branch
        %195 = sbr.rel (%p192) target = $region40
      $region39: #{ngram_forward.1} parent=5 // pred_region
        %s196 = ssub.s32 %s14, 1
        %s197 = smul.u32 16, %s19
        %p198 = scmp.lt.s32.totalorder %s197, 31
        %s199 = scalar_select %p198, %s197, 31
        %s200 = smul.addr %s199, 8
        %s201 = scalar_lea.vmem %s0, %s200
        %p202 = pneg %p40
        %p203 = pneg %p37
        %p204 = pneg %p61
        %p205 = pneg %p58
        %p206 = pneg %p82
        %p207 = pneg %p79
        %p208 = pneg %p103
        %p209 = pneg %p100
        %p210 = pneg %p124
        %p211 = pneg %p121
        %p212 = pneg %p150
        %p213 = pneg %p147
        %s214 = sand.u32 %s137, 1
        %s215 = scalar_lea.sflag [#allocation3], %s214
        %s216 = sand.u32 %s137, 1
        %s217 = smul.addr %s216, 256
        %s218 = scalar_lea.vmem [#allocation2], %s217
        %s219 = smul.u32 16, %s19
        %p220 = scmp.lt.s32.totalorder %s219, 31
        %s221 = scalar_select %p220, %s219, 31
        %s222 = smul.addr %s221, 8
        %s223 = scalar_lea.vmem %s0, %s222
        %s224 = smul.u32 16, %s19
        %s225 = smul.u32 16, %s19
        %v226 = vld [vmem:[%s223] sm:$0xff]
        %v227 = vld [vmem:[%s223 + $0x8] sm:$0xff]
        %v228 = vld [vmem:[%s223 + $0x10] sm:$0xff]
        %v229 = vld [vmem:[%s223 + $0x18] sm:$0xff]
        %v230 = vld [vmem:[%s223 + $0x20] sm:$0xff]
        %v231 = vld [vmem:[%s223 + $0x28] sm:$0xff]
        %v232 = vld [vmem:[%s223 + $0x30] sm:$0xff]
        %v233 = vld [vmem:[%s223 + $0x38] sm:$0xff]
        %v234 = vld [vmem:[%s223 + $0x40] sm:$0xff]
        %v235 = vld [vmem:[%s223 + $0x48] sm:$0xff]
        %v236 = vld [vmem:[%s223 + $0x50] sm:$0xff]
        %v237 = vld [vmem:[%s223 + $0x58] sm:$0xff]
        %v238 = vld [vmem:[%s223 + $0x60] sm:$0xff]
        %v239 = vld [vmem:[%s223 + $0x68] sm:$0xff]
        %v240 = vld [vmem:[%s223 + $0x70] sm:$0xff]
        %v241 = vld [vmem:[%s223 + $0x78] sm:$0xff]
        %v242 = vld [vmem:[%s1] sm:$0xff]
        %v243 = vld [vmem:[%s1 + $0x8] sm:$0xff]
        %v244 = vld [vmem:[%s1 + $0x10] sm:$0xff]
        %v245 = vld [vmem:[%s1 + $0x18] sm:$0xff]
        %v246 = vld [vmem:[%s1 + $0x20] sm:$0xff]
        %v247 = vld [vmem:[%s1 + $0x28] sm:$0xff]
        %v248 = vld [vmem:[%s1 + $0x30] sm:$0xff]
        %v249 = vld [vmem:[%s1 + $0x38] sm:$0xff]
        %v250 = vld [vmem:[%s1 + $0x40] sm:$0xff]
        %v251 = vld [vmem:[%s1 + $0x48] sm:$0xff]
        %v252 = vld [vmem:[%s1 + $0x50] sm:$0xff]
        %v253 = vld [vmem:[%s1 + $0x58] sm:$0xff]
        %v254 = vld [vmem:[%s1 + $0x60] sm:$0xff]
        %v255 = vld [vmem:[%s1 + $0x68] sm:$0xff]
        %v256 = vld [vmem:[%s1 + $0x70] sm:$0xff]
        %v257 = vld [vmem:[%s1 + $0x78] sm:$0xff]
        %v258 = vld [vmem:[%s2] sm:$0x1]
        %v260 = vlaneseq
        %v261 = vshrl.u32 %v260, 7
        %v262 = vsub.s32 0, %v261
        %v263 = vrot.slane %v258, %v262
        %265 = vmatprep.subr.mxu0 0.0
        %266 = vmatpush1.msra.mxu0 %v257
        %267 = vmatprep.subr.mxu0 0.0
        %268 = vmatpush1.msra.mxu0 %v256
        %269 = vmatprep.subr.mxu0 0.0
        %270 = vmatpush1.msra.mxu0 %v255
        %271 = vmatprep.subr.mxu0 0.0
        %272 = vmatpush1.msra.mxu0 %v254
        %273 = vmatprep.subr.mxu0 0.0
        %274 = vmatpush1.msra.mxu0 %v253
        %275 = vmatprep.subr.mxu0 0.0
        %276 = vmatpush1.msra.mxu0 %v252
        %277 = vmatprep.subr.mxu0 0.0
        %278 = vmatpush1.msra.mxu0 %v251
        %279 = vmatprep.subr.mxu0 0.0
        %280 = vmatpush1.msra.mxu0 %v250
        %281 = vmatprep.subr.mxu0 0.0
        %282 = vmatpush1.msra.mxu0 %v249
        %283 = vmatprep.subr.mxu0 0.0
        %284 = vmatpush1.msra.mxu0 %v248
        %285 = vmatprep.subr.mxu0 0.0
        %286 = vmatpush1.msra.mxu0 %v247
        %287 = vmatprep.subr.mxu0 0.0
        %288 = vmatpush1.msra.mxu0 %v246
        %289 = vmatprep.subr.mxu0 0.0
        %290 = vmatpush1.msra.mxu0 %v245
        %291 = vmatprep.subr.mxu0 0.0
        %292 = vmatpush1.msra.mxu0 %v244
        %293 = vmatprep.subr.mxu0 0.0
        %294 = vmatpush1.msra.mxu0 %v243
        %295 = vmatprep.subr.mxu0 0.0
        %296 = vmatpush1.msra.mxu0 %v242
        %297 = vmatprep.subr.mxu0 0.0
        %298 = vmatpush2.msra.mxu0 0.0
        %299 = vmatprep.subr.mxu0 0.0
        %300 = vmatpush2.msra.mxu0 0.0
        %301 = vmatprep.subr.mxu0 0.0
        %302 = vmatpush2.msra.mxu0 0.0
        %303 = vmatprep.subr.mxu0 0.0
        %304 = vmatpush2.msra.mxu0 0.0
        %305 = vmatprep.subr.mxu0 0.0
        %306 = vmatpush2.msra.mxu0 0.0
        %307 = vmatprep.subr.mxu0 0.0
        %308 = vmatpush2.msra.mxu0 0.0
        %309 = vmatprep.subr.mxu0 0.0
        %310 = vmatpush2.msra.mxu0 0.0
        %311 = vmatprep.subr.mxu0 0.0
        %312 = vmatpush2.msra.mxu0 0.0
        %313 = vmatprep.subr.mxu0 0.0
        %314 = vmatpush2.msra.mxu0 0.0
        %315 = vmatprep.subr.mxu0 0.0
        %316 = vmatpush2.msra.mxu0 0.0
        %317 = vmatprep.subr.mxu0 0.0
        %318 = vmatpush2.msra.mxu0 0.0
        %319 = vmatprep.subr.mxu0 0.0
        %320 = vmatpush2.msra.mxu0 0.0
        %321 = vmatprep.subr.mxu0 0.0
        %322 = vmatpush2.msra.mxu0 0.0
        %323 = vmatprep.subr.mxu0 0.0
        %324 = vmatpush2.msra.mxu0 0.0
        %325 = vmatprep.subr.mxu0 0.0
        %326 = vmatpush2.msra.mxu0 0.0
        %327 = vmatprep.subr.mxu0 0.0
        %328 = vmatpush2.msra.mxu0 0.0
        %329 = vmatprep.mubr.f32.mxu0 0.0
        %330 = vmatmul.mubr.f32.gmra.mxu0 %v226
        %v331 = vpop.f32.mrf.mxu0
        %v332 = vadd.f32 %v263, %v331
        %v333 = vpop.f32.mrf.mxu0
        %334 = vmatprep.mubr.f32.mxu0 0.0
        %335 = vmatmul.mubr.f32.gmra.mxu0 %v227
        %v336 = vpop.f32.mrf.mxu0
        %v337 = vadd.f32 %v263, %v336
        %v338 = vpop.f32.mrf.mxu0
        %339 = vmatprep.mubr.f32.mxu0 0.0
        %340 = vmatmul.mubr.f32.gmra.mxu0 %v228
        %v341 = vpop.f32.mrf.mxu0
        %v342 = vadd.f32 %v263, %v341
        %v343 = vpop.f32.mrf.mxu0
        %344 = vmatprep.mubr.f32.mxu0 0.0
        %345 = vmatmul.mubr.f32.gmra.mxu0 %v229
        %v346 = vpop.f32.mrf.mxu0
        %v347 = vadd.f32 %v263, %v346
        %v348 = vpop.f32.mrf.mxu0
        %349 = vmatprep.mubr.f32.mxu0 0.0
        %350 = vmatmul.mubr.f32.gmra.mxu0 %v230
        %v351 = vpop.f32.mrf.mxu0
        %v352 = vadd.f32 %v263, %v351
        %v353 = vpop.f32.mrf.mxu0
        %354 = vmatprep.mubr.f32.mxu0 0.0
        %355 = vmatmul.mubr.f32.gmra.mxu0 %v231
        %v356 = vpop.f32.mrf.mxu0
        %v357 = vadd.f32 %v263, %v356
        %v358 = vpop.f32.mrf.mxu0
        %359 = vmatprep.mubr.f32.mxu0 0.0
        %360 = vmatmul.mubr.f32.gmra.mxu0 %v232
        %v361 = vpop.f32.mrf.mxu0
        %v362 = vadd.f32 %v263, %v361
        %v363 = vpop.f32.mrf.mxu0
        %364 = vmatprep.mubr.f32.mxu0 0.0
        %365 = vmatmul.mubr.f32.gmra.mxu0 %v233
        %v366 = vpop.f32.mrf.mxu0
        %v367 = vadd.f32 %v263, %v366
        %v368 = vpop.f32.mrf.mxu0
        %369 = vmatprep.mubr.f32.mxu0 0.0
        %370 = vmatmul.mubr.f32.gmra.mxu0 %v234
        %v371 = vpop.f32.mrf.mxu0
        %v372 = vadd.f32 %v263, %v371
        %v373 = vpop.f32.mrf.mxu0
        %374 = vmatprep.mubr.f32.mxu0 0.0
        %375 = vmatmul.mubr.f32.gmra.mxu0 %v235
        %v376 = vpop.f32.mrf.mxu0
        %v377 = vadd.f32 %v263, %v376
        %v378 = vpop.f32.mrf.mxu0
        %379 = vmatprep.mubr.f32.mxu0 0.0
        %380 = vmatmul.mubr.f32.gmra.mxu0 %v236
        %v381 = vpop.f32.mrf.mxu0
        %v382 = vadd.f32 %v263, %v381
        %v383 = vpop.f32.mrf.mxu0
        %384 = vmatprep.mubr.f32.mxu0 0.0
        %385 = vmatmul.mubr.f32.gmra.mxu0 %v237
        %v386 = vpop.f32.mrf.mxu0
        %v387 = vadd.f32 %v263, %v386
        %v388 = vpop.f32.mrf.mxu0
        %389 = vmatprep.mubr.f32.mxu0 0.0
        %390 = vmatmul.mubr.f32.gmra.mxu0 %v238
        %v391 = vpop.f32.mrf.mxu0
        %v392 = vadd.f32 %v263, %v391
        %v393 = vpop.f32.mrf.mxu0
        %394 = vmatprep.mubr.f32.mxu0 0.0
        %395 = vmatmul.mubr.f32.gmra.mxu0 %v239
        %v396 = vpop.f32.mrf.mxu0
        %v397 = vadd.f32 %v263, %v396
        %v398 = vpop.f32.mrf.mxu0
        %399 = vmatprep.mubr.f32.mxu0 0.0
        %400 = vmatmul.mubr.f32.gmra.mxu0 %v240
        %v401 = vpop.f32.mrf.mxu0
        %v402 = vadd.f32 %v263, %v401
        %v403 = vpop.f32.mrf.mxu0
        %404 = vmatprep.mubr.f32.mxu0 0.0
        %405 = vmatmul.mubr.f32.gmra.mxu0 %v241
        %v406 = vpop.f32.mrf.mxu0
        %v407 = vadd.f32 %v263, %v406
        %v408 = vpop.f32.mrf.mxu0
        %409 = vdwg.mxu0
        %v410 = vmax.f32 %v332, 0.0
        %v411 = vmax.f32 %v337, 0.0
        %v412 = vmax.f32 %v342, 0.0
        %v413 = vmax.f32 %v347, 0.0
        %v414 = vmax.f32 %v352, 0.0
        %v415 = vmax.f32 %v357, 0.0
        %v416 = vmax.f32 %v362, 0.0
        %v417 = vmax.f32 %v367, 0.0
        %v418 = vmax.f32 %v372, 0.0
        %v419 = vmax.f32 %v377, 0.0
        %v420 = vmax.f32 %v382, 0.0
        %v421 = vmax.f32 %v387, 0.0
        %v422 = vmax.f32 %v392, 0.0
        %v423 = vmax.f32 %v397, 0.0
        %v424 = vmax.f32 %v402, 0.0
        %v425 = vmax.f32 %v407, 0.0
        %v426 = vld [vmem:[%s3] sm:$0xff]
        %v427 = vld [vmem:[%s3 + $0x8] sm:$0xff]
        %v428 = vld [vmem:[%s3 + $0x10] sm:$0xff]
        %v429 = vld [vmem:[%s3 + $0x18] sm:$0xff]
        %v430 = vld [vmem:[%s3 + $0x20] sm:$0xff]
        %v431 = vld [vmem:[%s3 + $0x28] sm:$0xff]
        %v432 = vld [vmem:[%s3 + $0x30] sm:$0xff]
        %v433 = vld [vmem:[%s3 + $0x38] sm:$0xff]
        %v434 = vld [vmem:[%s3 + $0x40] sm:$0xff]
        %v435 = vld [vmem:[%s3 + $0x48] sm:$0xff]
        %v436 = vld [vmem:[%s3 + $0x50] sm:$0xff]
        %v437 = vld [vmem:[%s3 + $0x58] sm:$0xff]
        %v438 = vld [vmem:[%s3 + $0x60] sm:$0xff]
        %v439 = vld [vmem:[%s3 + $0x68] sm:$0xff]
        %v440 = vld [vmem:[%s3 + $0x70] sm:$0xff]
        %v441 = vld [vmem:[%s3 + $0x78] sm:$0xff]
        %v442 = vld [vmem:[%s3 + $0x80] sm:$0xff]
        %v443 = vld [vmem:[%s3 + $0x88] sm:$0xff]
        %v444 = vld [vmem:[%s3 + $0x90] sm:$0xff]
        %v445 = vld [vmem:[%s3 + $0x98] sm:$0xff]
        %v446 = vld [vmem:[%s3 + $0xa0] sm:$0xff]
        %v447 = vld [vmem:[%s3 + $0xa8] sm:$0xff]
        %v448 = vld [vmem:[%s3 + $0xb0] sm:$0xff]
        %v449 = vld [vmem:[%s3 + $0xb8] sm:$0xff]
        %v450 = vld [vmem:[%s3 + $0xc0] sm:$0xff]
        %v451 = vld [vmem:[%s3 + $0xc8] sm:$0xff]
        %v452 = vld [vmem:[%s3 + $0xd0] sm:$0xff]
        %v453 = vld [vmem:[%s3 + $0xd8] sm:$0xff]
        %v454 = vld [vmem:[%s3 + $0xe0] sm:$0xff]
        %v455 = vld [vmem:[%s3 + $0xe8] sm:$0xff]
        %v456 = vld [vmem:[%s3 + $0xf0] sm:$0xff]
        %v457 = vld [vmem:[%s3 + $0xf8] sm:$0xff]
        %v458 = vld [vmem:[%s4] sm:$0x3]
        %v460 = vlaneseq
        %v461 = vshrl.u32 %v460, 7
        %v462 = vsub.s32 0, %v461
        %v463 = vrot.slane %v458, %v462
        %v464 = vlaneseq
        %v465 = vshrl.u32 %v464, 7
        %v466 = vsub.s32 1, %v465
        %v467 = vrot.slane %v458, %v466
        %470 = vmatprep.subr.mxu0 %v457
        %471 = vmatpush1.msra.mxu0 %v456
        %472 = vmatprep.subr.mxu0 %v455
        %473 = vmatpush1.msra.mxu0 %v454
        %474 = vmatprep.subr.mxu0 %v453
        %475 = vmatpush1.msra.mxu0 %v452
        %476 = vmatprep.subr.mxu0 %v451
        %477 = vmatpush1.msra.mxu0 %v450
        %478 = vmatprep.subr.mxu0 %v449
        %479 = vmatpush1.msra.mxu0 %v448
        %480 = vmatprep.subr.mxu0 %v447
        %481 = vmatpush1.msra.mxu0 %v446
        %482 = vmatprep.subr.mxu0 %v445
        %483 = vmatpush1.msra.mxu0 %v444
        %484 = vmatprep.subr.mxu0 %v443
        %485 = vmatpush1.msra.mxu0 %v442
        %486 = vmatprep.subr.mxu0 %v441
        %487 = vmatpush1.msra.mxu0 %v440
        %488 = vmatprep.subr.mxu0 %v439
        %489 = vmatpush1.msra.mxu0 %v438
        %490 = vmatprep.subr.mxu0 %v437
        %491 = vmatpush1.msra.mxu0 %v436
        %492 = vmatprep.subr.mxu0 %v435
        %493 = vmatpush1.msra.mxu0 %v434
        %494 = vmatprep.subr.mxu0 %v433
        %495 = vmatpush1.msra.mxu0 %v432
        %496 = vmatprep.subr.mxu0 %v431
        %497 = vmatpush1.msra.mxu0 %v430
        %498 = vmatprep.subr.mxu0 %v429
        %499 = vmatpush1.msra.mxu0 %v428
        %500 = vmatprep.subr.mxu0 %v427
        %501 = vmatpush1.msra.mxu0 %v426
        %502 = vmatprep.subr.mxu0 0.0
        %503 = vmatpush2.msra.mxu0 0.0
        %504 = vmatprep.subr.mxu0 0.0
        %505 = vmatpush2.msra.mxu0 0.0
        %506 = vmatprep.subr.mxu0 0.0
        %507 = vmatpush2.msra.mxu0 0.0
        %508 = vmatprep.subr.mxu0 0.0
        %509 = vmatpush2.msra.mxu0 0.0
        %510 = vmatprep.subr.mxu0 0.0
        %511 = vmatpush2.msra.mxu0 0.0
        %512 = vmatprep.subr.mxu0 0.0
        %513 = vmatpush2.msra.mxu0 0.0
        %514 = vmatprep.subr.mxu0 0.0
        %515 = vmatpush2.msra.mxu0 0.0
        %516 = vmatprep.subr.mxu0 0.0
        %517 = vmatpush2.msra.mxu0 0.0
        %518 = vmatprep.subr.mxu0 0.0
        %519 = vmatpush2.msra.mxu0 0.0
        %520 = vmatprep.subr.mxu0 0.0
        %521 = vmatpush2.msra.mxu0 0.0
        %522 = vmatprep.subr.mxu0 0.0
        %523 = vmatpush2.msra.mxu0 0.0
        %524 = vmatprep.subr.mxu0 0.0
        %525 = vmatpush2.msra.mxu0 0.0
        %526 = vmatprep.subr.mxu0 0.0
        %527 = vmatpush2.msra.mxu0 0.0
        %528 = vmatprep.subr.mxu0 0.0
        %529 = vmatpush2.msra.mxu0 0.0
        %530 = vmatprep.subr.mxu0 0.0
        %531 = vmatpush2.msra.mxu0 0.0
        %532 = vmatprep.subr.mxu0 0.0
        %533 = vmatpush2.msra.mxu0 0.0
        %534 = vmatprep.mubr.f32.mxu0 0.0
        %535 = vmatmul.mubr.f32.gmra.mxu0 %v410
        %v536 = vpop.f32.mrf.mxu0
        %v537 = vadd.f32 %v463, %v536
        %v538 = vpop.f32.mrf.mxu0
        %v539 = vadd.f32 %v467, %v538
        %540 = vmatprep.mubr.f32.mxu0 0.0
        %541 = vmatmul.mubr.f32.gmra.mxu0 %v411
        %v542 = vpop.f32.mrf.mxu0
        %v543 = vadd.f32 %v463, %v542
        %v544 = vpop.f32.mrf.mxu0
        %v545 = vadd.f32 %v467, %v544
        %546 = vmatprep.mubr.f32.mxu0 0.0
        %547 = vmatmul.mubr.f32.gmra.mxu0 %v412
        %v548 = vpop.f32.mrf.mxu0
        %v549 = vadd.f32 %v463, %v548
        %v550 = vpop.f32.mrf.mxu0
        %v551 = vadd.f32 %v467, %v550
        %552 = vmatprep.mubr.f32.mxu0 0.0
        %553 = vmatmul.mubr.f32.gmra.mxu0 %v413
        %v554 = vpop.f32.mrf.mxu0
        %v555 = vadd.f32 %v463, %v554
        %v556 = vpop.f32.mrf.mxu0
        %v557 = vadd.f32 %v467, %v556
        %558 = vmatprep.mubr.f32.mxu0 0.0
        %559 = vmatmul.mubr.f32.gmra.mxu0 %v414
        %v560 = vpop.f32.mrf.mxu0
        %v561 = vadd.f32 %v463, %v560
        %v562 = vpop.f32.mrf.mxu0
        %v563 = vadd.f32 %v467, %v562
        %564 = vmatprep.mubr.f32.mxu0 0.0
        %565 = vmatmul.mubr.f32.gmra.mxu0 %v415
        %v566 = vpop.f32.mrf.mxu0
        %v567 = vadd.f32 %v463, %v566
        %v568 = vpop.f32.mrf.mxu0
        %v569 = vadd.f32 %v467, %v568
        %570 = vmatprep.mubr.f32.mxu0 0.0
        %571 = vmatmul.mubr.f32.gmra.mxu0 %v416
        %v572 = vpop.f32.mrf.mxu0
        %v573 = vadd.f32 %v463, %v572
        %v574 = vpop.f32.mrf.mxu0
        %v575 = vadd.f32 %v467, %v574
        %576 = vmatprep.mubr.f32.mxu0 0.0
        %577 = vmatmul.mubr.f32.gmra.mxu0 %v417
        %v578 = vpop.f32.mrf.mxu0
        %v579 = vadd.f32 %v463, %v578
        %v580 = vpop.f32.mrf.mxu0
        %v581 = vadd.f32 %v467, %v580
        %582 = vmatprep.mubr.f32.mxu0 0.0
        %583 = vmatmul.mubr.f32.gmra.mxu0 %v418
        %v584 = vpop.f32.mrf.mxu0
        %v585 = vadd.f32 %v463, %v584
        %v586 = vpop.f32.mrf.mxu0
        %v587 = vadd.f32 %v467, %v586
        %588 = vmatprep.mubr.f32.mxu0 0.0
        %589 = vmatmul.mubr.f32.gmra.mxu0 %v419
        %v590 = vpop.f32.mrf.mxu0
        %v591 = vadd.f32 %v463, %v590
        %v592 = vpop.f32.mrf.mxu0
        %v593 = vadd.f32 %v467, %v592
        %594 = vmatprep.mubr.f32.mxu0 0.0
        %595 = vmatmul.mubr.f32.gmra.mxu0 %v420
        %v596 = vpop.f32.mrf.mxu0
        %v597 = vadd.f32 %v463, %v596
        %v598 = vpop.f32.mrf.mxu0
        %v599 = vadd.f32 %v467, %v598
        %600 = vmatprep.mubr.f32.mxu0 0.0
        %601 = vmatmul.mubr.f32.gmra.mxu0 %v421
        %v602 = vpop.f32.mrf.mxu0
        %v603 = vadd.f32 %v463, %v602
        %v604 = vpop.f32.mrf.mxu0
        %v605 = vadd.f32 %v467, %v604
        %606 = vmatprep.mubr.f32.mxu0 0.0
        %607 = vmatmul.mubr.f32.gmra.mxu0 %v422
        %v608 = vpop.f32.mrf.mxu0
        %v609 = vadd.f32 %v463, %v608
        %v610 = vpop.f32.mrf.mxu0
        %v611 = vadd.f32 %v467, %v610
        %612 = vmatprep.mubr.f32.mxu0 0.0
        %613 = vmatmul.mubr.f32.gmra.mxu0 %v423
        %v614 = vpop.f32.mrf.mxu0
        %v615 = vadd.f32 %v463, %v614
        %v616 = vpop.f32.mrf.mxu0
        %v617 = vadd.f32 %v467, %v616
        %618 = vmatprep.mubr.f32.mxu0 0.0
        %619 = vmatmul.mubr.f32.gmra.mxu0 %v424
        %v620 = vpop.f32.mrf.mxu0
        %v621 = vadd.f32 %v463, %v620
        %v622 = vpop.f32.mrf.mxu0
        %v623 = vadd.f32 %v467, %v622
        %624 = vmatprep.mubr.f32.mxu0 0.0
        %625 = vmatmul.mubr.f32.gmra.mxu0 %v425
        %v626 = vpop.f32.mrf.mxu0
        %v627 = vadd.f32 %v463, %v626
        %v628 = vpop.f32.mrf.mxu0
        %v629 = vadd.f32 %v467, %v628
        %630 = vdwg.mxu0
        %v631 = vmax.f32 %v537, %v539
        %632 = vmax.xlane.f32.xlu0 %v631
        %v633 = vpop.xlane.xlu0 %632
        %v634 = vmax.f32 %v543, %v545
        %635 = vmax.xlane.f32.xlu0 %v634
        %v636 = vpop.xlane.xlu0 %635
        %v637 = vmax.f32 %v549, %v551
        %638 = vmax.xlane.f32.xlu0 %v637
        %v639 = vpop.xlane.xlu0 %638
        %v640 = vmax.f32 %v555, %v557
        %641 = vmax.xlane.f32.xlu0 %v640
        %v642 = vpop.xlane.xlu0 %641
        %v643 = vmax.f32 %v561, %v563
        %644 = vmax.xlane.f32.xlu0 %v643
        %v645 = vpop.xlane.xlu0 %644
        %v646 = vmax.f32 %v567, %v569
        %647 = vmax.xlane.f32.xlu0 %v646
        %v648 = vpop.xlane.xlu0 %647
        %v649 = vmax.f32 %v573, %v575
        %650 = vmax.xlane.f32.xlu0 %v649
        %v651 = vpop.xlane.xlu0 %650
        %v652 = vmax.f32 %v579, %v581
        %653 = vmax.xlane.f32.xlu0 %v652
        %v654 = vpop.xlane.xlu0 %653
        %v655 = vmax.f32 %v585, %v587
        %656 = vmax.xlane.f32.xlu0 %v655
        %v657 = vpop.xlane.xlu0 %656
        %v658 = vmax.f32 %v591, %v593
        %659 = vmax.xlane.f32.xlu0 %v658
        %v660 = vpop.xlane.xlu0 %659
        %v661 = vmax.f32 %v597, %v599
        %662 = vmax.xlane.f32.xlu0 %v661
        %v663 = vpop.xlane.xlu0 %662
        %v664 = vmax.f32 %v603, %v605
        %665 = vmax.xlane.f32.xlu0 %v664
        %v666 = vpop.xlane.xlu0 %665
        %v667 = vmax.f32 %v609, %v611
        %668 = vmax.xlane.f32.xlu0 %v667
        %v669 = vpop.xlane.xlu0 %668
        %v670 = vmax.f32 %v615, %v617
        %671 = vmax.xlane.f32.xlu0 %v670
        %v672 = vpop.xlane.xlu0 %671
        %v673 = vmax.f32 %v621, %v623
        %674 = vmax.xlane.f32.xlu0 %v673
        %v675 = vpop.xlane.xlu0 %674
        %v676 = vmax.f32 %v627, %v629
        %677 = vmax.xlane.f32.xlu0 %v676
        %v678 = vpop.xlane.xlu0 %677
        %v679 = vsub.f32 %v537, %v633
        %v680 = vsub.f32 %v539, %v633
        %v681 = vsub.f32 %v543, %v636
        %v682 = vsub.f32 %v545, %v636
        %v683 = vsub.f32 %v549, %v639
        %v684 = vsub.f32 %v551, %v639
        %v685 = vsub.f32 %v555, %v642
        %v686 = vsub.f32 %v557, %v642
        %v687 = vsub.f32 %v561, %v645
        %v688 = vsub.f32 %v563, %v645
        %v689 = vsub.f32 %v567, %v648
        %v690 = vsub.f32 %v569, %v648
        %v691 = vsub.f32 %v573, %v651
        %v692 = vsub.f32 %v575, %v651
        %v693 = vsub.f32 %v579, %v654
        %v694 = vsub.f32 %v581, %v654
        %v695 = vsub.f32 %v585, %v657
        %v696 = vsub.f32 %v587, %v657
        %v697 = vsub.f32 %v591, %v660
        %v698 = vsub.f32 %v593, %v660
        %v699 = vsub.f32 %v597, %v663
        %v700 = vsub.f32 %v599, %v663
        %v701 = vsub.f32 %v603, %v666
        %v702 = vsub.f32 %v605, %v666
        %v703 = vsub.f32 %v609, %v669
        %v704 = vsub.f32 %v611, %v669
        %v705 = vsub.f32 %v615, %v672
        %v706 = vsub.f32 %v617, %v672
        %v707 = vsub.f32 %v621, %v675
        %v708 = vsub.f32 %v623, %v675
        %v709 = vsub.f32 %v627, %v678
        %v710 = vsub.f32 %v629, %v678
        %v711 = vmul.f32 %v679, 1.442695
        %v712 = vpow.pop %v711
        %v713 = vmul.f32 %v680, 1.442695
        %v714 = vpow.pop %v713
        %v715 = vmul.f32 %v681, 1.442695
        %v716 = vpow.pop %v715
        %v717 = vmul.f32 %v682, 1.442695
        %v718 = vpow.pop %v717
        %v719 = vmul.f32 %v683, 1.442695
        %v720 = vpow.pop %v719
        %v721 = vmul.f32 %v684, 1.442695
        %v722 = vpow.pop %v721
        %v723 = vmul.f32 %v685, 1.442695
        %v724 = vpow.pop %v723
        %v725 = vmul.f32 %v686, 1.442695
        %v726 = vpow.pop %v725
        %v727 = vmul.f32 %v687, 1.442695
        %v728 = vpow.pop %v727
        %v729 = vmul.f32 %v688, 1.442695
        %v730 = vpow.pop %v729
        %v731 = vmul.f32 %v689, 1.442695
        %v732 = vpow.pop %v731
        %v733 = vmul.f32 %v690, 1.442695
        %v734 = vpow.pop %v733
        %v735 = vmul.f32 %v691, 1.442695
        %v736 = vpow.pop %v735
        %v737 = vmul.f32 %v692, 1.442695
        %v738 = vpow.pop %v737
        %v739 = vmul.f32 %v693, 1.442695
        %v740 = vpow.pop %v739
        %v741 = vmul.f32 %v694, 1.442695
        %v742 = vpow.pop %v741
        %v743 = vmul.f32 %v695, 1.442695
        %v744 = vpow.pop %v743
        %v745 = vmul.f32 %v696, 1.442695
        %v746 = vpow.pop %v745
        %v747 = vmul.f32 %v697, 1.442695
        %v748 = vpow.pop %v747
        %v749 = vmul.f32 %v698, 1.442695
        %v750 = vpow.pop %v749
        %v751 = vmul.f32 %v699, 1.442695
        %v752 = vpow.pop %v751
        %v753 = vmul.f32 %v700, 1.442695
        %v754 = vpow.pop %v753
        %v755 = vmul.f32 %v701, 1.442695
        %v756 = vpow.pop %v755
        %v757 = vmul.f32 %v702, 1.442695
        %v758 = vpow.pop %v757
        %v759 = vmul.f32 %v703, 1.442695
        %v760 = vpow.pop %v759
        %v761 = vmul.f32 %v704, 1.442695
        %v762 = vpow.pop %v761
        %v763 = vmul.f32 %v705, 1.442695
        %v764 = vpow.pop %v763
        %v765 = vmul.f32 %v706, 1.442695
        %v766 = vpow.pop %v765
        %v767 = vmul.f32 %v707, 1.442695
        %v768 = vpow.pop %v767
        %v769 = vmul.f32 %v708, 1.442695
        %v770 = vpow.pop %v769
        %v771 = vmul.f32 %v709, 1.442695
        %v772 = vpow.pop %v771
        %v773 = vmul.f32 %v710, 1.442695
        %v774 = vpow.pop %v773
        %v775 = vadd.f32 %v712, %v714
        %776 = vadd.xlane.f32.xlu0 %v775
        %v777 = vpop.xlane.xlu0 %776
        %v778 = vadd.f32 %v716, %v718
        %779 = vadd.xlane.f32.xlu0 %v778
        %v780 = vpop.xlane.xlu0 %779
        %v781 = vadd.f32 %v720, %v722
        %782 = vadd.xlane.f32.xlu0 %v781
        %v783 = vpop.xlane.xlu0 %782
        %v784 = vadd.f32 %v724, %v726
        %785 = vadd.xlane.f32.xlu0 %v784
        %v786 = vpop.xlane.xlu0 %785
        %v787 = vadd.f32 %v728, %v730
        %788 = vadd.xlane.f32.xlu0 %v787
        %v789 = vpop.xlane.xlu0 %788
        %v790 = vadd.f32 %v732, %v734
        %791 = vadd.xlane.f32.xlu0 %v790
        %v792 = vpop.xlane.xlu0 %791
        %v793 = vadd.f32 %v736, %v738
        %794 = vadd.xlane.f32.xlu0 %v793
        %v795 = vpop.xlane.xlu0 %794
        %v796 = vadd.f32 %v740, %v742
        %797 = vadd.xlane.f32.xlu0 %v796
        %v798 = vpop.xlane.xlu0 %797
        %v799 = vadd.f32 %v744, %v746
        %800 = vadd.xlane.f32.xlu0 %v799
        %v801 = vpop.xlane.xlu0 %800
        %v802 = vadd.f32 %v748, %v750
        %803 = vadd.xlane.f32.xlu0 %v802
        %v804 = vpop.xlane.xlu0 %803
        %v805 = vadd.f32 %v752, %v754
        %806 = vadd.xlane.f32.xlu0 %v805
        %v807 = vpop.xlane.xlu0 %806
        %v808 = vadd.f32 %v756, %v758
        %809 = vadd.xlane.f32.xlu0 %v808
        %v810 = vpop.xlane.xlu0 %809
        %v811 = vadd.f32 %v760, %v762
        %812 = vadd.xlane.f32.xlu0 %v811
        %v813 = vpop.xlane.xlu0 %812
        %v814 = vadd.f32 %v764, %v766
        %815 = vadd.xlane.f32.xlu0 %v814
        %v816 = vpop.xlane.xlu0 %815
        %v817 = vadd.f32 %v768, %v770
        %818 = vadd.xlane.f32.xlu0 %v817
        %v819 = vpop.xlane.xlu0 %818
        %v820 = vadd.f32 %v772, %v774
        %821 = vadd.xlane.f32.xlu0 %v820
        %v822 = vpop.xlane.xlu0 %821
        %v823 = vlog2.pop %v777
        %v824 = vmul.f32 %v823, 0.6931472
        %v825 = vlog2.pop %v780
        %v826 = vmul.f32 %v825, 0.6931472
        %v827 = vlog2.pop %v783
        %v828 = vmul.f32 %v827, 0.6931472
        %v829 = vlog2.pop %v786
        %v830 = vmul.f32 %v829, 0.6931472
        %v831 = vlog2.pop %v789
        %v832 = vmul.f32 %v831, 0.6931472
        %v833 = vlog2.pop %v792
        %v834 = vmul.f32 %v833, 0.6931472
        %v835 = vlog2.pop %v795
        %v836 = vmul.f32 %v835, 0.6931472
        %v837 = vlog2.pop %v798
        %v838 = vmul.f32 %v837, 0.6931472
        %v839 = vlog2.pop %v801
        %v840 = vmul.f32 %v839, 0.6931472
        %v841 = vlog2.pop %v804
        %v842 = vmul.f32 %v841, 0.6931472
        %v843 = vlog2.pop %v807
        %v844 = vmul.f32 %v843, 0.6931472
        %v845 = vlog2.pop %v810
        %v846 = vmul.f32 %v845, 0.6931472
        %v847 = vlog2.pop %v813
        %v848 = vmul.f32 %v847, 0.6931472
        %v849 = vlog2.pop %v816
        %v850 = vmul.f32 %v849, 0.6931472
        %v851 = vlog2.pop %v819
        %v852 = vmul.f32 %v851, 0.6931472
        %v853 = vlog2.pop %v822
        %v854 = vmul.f32 %v853, 0.6931472
        %v855 = vsub.f32 %v679, %v824
        %v856 = vsub.f32 %v680, %v824
        %v857 = vsub.f32 %v681, %v826
        %v858 = vsub.f32 %v682, %v826
        %v859 = vsub.f32 %v683, %v828
        %v860 = vsub.f32 %v684, %v828
        %v861 = vsub.f32 %v685, %v830
        %v862 = vsub.f32 %v686, %v830
        %v863 = vsub.f32 %v687, %v832
        %v864 = vsub.f32 %v688, %v832
        %v865 = vsub.f32 %v689, %v834
        %v866 = vsub.f32 %v690, %v834
        %v867 = vsub.f32 %v691, %v836
        %v868 = vsub.f32 %v692, %v836
        %v869 = vsub.f32 %v693, %v838
        %v870 = vsub.f32 %v694, %v838
        %v871 = vsub.f32 %v695, %v840
        %v872 = vsub.f32 %v696, %v840
        %v873 = vsub.f32 %v697, %v842
        %v874 = vsub.f32 %v698, %v842
        %v875 = vsub.f32 %v699, %v844
        %v876 = vsub.f32 %v700, %v844
        %v877 = vsub.f32 %v701, %v846
        %v878 = vsub.f32 %v702, %v846
        %v879 = vsub.f32 %v703, %v848
        %v880 = vsub.f32 %v704, %v848
        %v881 = vsub.f32 %v705, %v850
        %v882 = vsub.f32 %v706, %v850
        %v883 = vsub.f32 %v707, %v852
        %v884 = vsub.f32 %v708, %v852
        %v885 = vsub.f32 %v709, %v854
        %v886 = vsub.f32 %v710, %v854
        %887 = vst [vmem:[%s218] sm:$0xff] %v855
        %888 = vst [vmem:[%s218 + $0x8] sm:$0xff] %v856
        %889 = vst [vmem:[%s218 + $0x10] sm:$0xff] %v857
        %890 = vst [vmem:[%s218 + $0x18] sm:$0xff] %v858
        %891 = vst [vmem:[%s218 + $0x20] sm:$0xff] %v859
        %892 = vst [vmem:[%s218 + $0x28] sm:$0xff] %v860
        %893 = vst [vmem:[%s218 + $0x30] sm:$0xff] %v861
        %894 = vst [vmem:[%s218 + $0x38] sm:$0xff] %v862
        %895 = vst [vmem:[%s218 + $0x40] sm:$0xff] %v863
        %896 = vst [vmem:[%s218 + $0x48] sm:$0xff] %v864
        %897 = vst [vmem:[%s218 + $0x50] sm:$0xff] %v865
        %898 = vst [vmem:[%s218 + $0x58] sm:$0xff] %v866
        %899 = vst [vmem:[%s218 + $0x60] sm:$0xff] %v867
        %900 = vst [vmem:[%s218 + $0x68] sm:$0xff] %v868
        %901 = vst [vmem:[%s218 + $0x70] sm:$0xff] %v869
        %902 = vst [vmem:[%s218 + $0x78] sm:$0xff] %v870
        %903 = vst [vmem:[%s218 + $0x80] sm:$0xff] %v871
        %904 = vst [vmem:[%s218 + $0x88] sm:$0xff] %v872
        %905 = vst [vmem:[%s218 + $0x90] sm:$0xff] %v873
        %906 = vst [vmem:[%s218 + $0x98] sm:$0xff] %v874
        %907 = vst [vmem:[%s218 + $0xa0] sm:$0xff] %v875
        %908 = vst [vmem:[%s218 + $0xa8] sm:$0xff] %v876
        %909 = vst [vmem:[%s218 + $0xb0] sm:$0xff] %v877
        %910 = vst [vmem:[%s218 + $0xb8] sm:$0xff] %v878
        %911 = vst [vmem:[%s218 + $0xc0] sm:$0xff] %v879
        %912 = vst [vmem:[%s218 + $0xc8] sm:$0xff] %v880
        %913 = vst [vmem:[%s218 + $0xd0] sm:$0xff] %v881
        %914 = vst [vmem:[%s218 + $0xd8] sm:$0xff] %v882
        %915 = vst [vmem:[%s218 + $0xe0] sm:$0xff] %v883
        %916 = vst [vmem:[%s218 + $0xe8] sm:$0xff] %v884
        %917 = vst [vmem:[%s218 + $0xf0] sm:$0xff] %v885
        %918 = vst [vmem:[%s218 + $0xf8] sm:$0xff] %v886
        %s919 = sand.u32 %s137, 1
        %s920 = scalar_lea.sflag [#allocation3], %s919
        %s921 = sand.u32 %s137, 1
        %s922 = smul.addr %s921, 256
        %s923 = scalar_lea.vmem [#allocation2], %s922
        // Predicated region
        $region41: #{ngram_forward.1} parent=39 // pred_check
          %p924 = pneg %p147
        $region42: #{ngram_forward.1} parent=39 // pred_check_branch
          %926 = sbr.rel (%p924) target = $region44
        $region43: #{ngram_forward.1} parent=39 // pred_region
          %s927 = smul.u32 16, %s19
          %s929 = ssub.s32 4096, 4096
          %930 = vsyncadd %s920, %s929
          %s931 = smul.addr %s927, 2
          %s932 = smul.addr %s931, 128
          %s933 = scalar_lea.hbm %s5, %s932
          %s934 = sshll.u32 %s923, 4
          %s935 = int_to_ptr.vmem [resolvable:$true] %s934
          %940 = dma.vmem_to_hbm [thread:$0]  %s935, 4096, %s933, %s920, 256, 256, 16
        $region44: #{ngram_forward.1} parent=39 // pred_fallthru
          _
      $region40: #{ngram_forward.1} parent=5 // pred_fallthru
        _
      %p941 = scmp.le.s32.totalorder 2, %s14
      // Predicated region
      $region45: #{ngram_forward.1} parent=5 // pred_check
        %p942 = pneg %p941
      $region46: #{ngram_forward.1} parent=5 // pred_check_branch
        %944 = sbr.rel (%p942) target = $region48
      $region47: #{ngram_forward.1} parent=5 // pred_region
        %s945 = ssub.s32 %s14, 2
        // Predicated region
        $region49: #{ngram_forward.1} parent=47 // pred_check
          %p946 = pneg %p153
        $region50: #{ngram_forward.1} parent=47 // pred_check_branch
          %948 = sbr.rel (%p946) target = $region52
        $region51: #{ngram_forward.1} parent=47 // pred_region
          %s949 = sand.u32 %s138, 1
          %s950 = scalar_lea.sflag [#allocation3], %s949
          %s951 = sand.u32 %s138, 1
          %s952 = smul.addr %s951, 256
          %s953 = scalar_lea.vmem [#allocation2], %s952
          %954 = dma.done %s950, 4096
        $region52: #{ngram_forward.1} parent=47 // pred_fallthru
          _
      $region48: #{ngram_forward.1} parent=5 // pred_fallthru
        _
    $region6: #{ngram_forward.1} parent=1 // loop_footer
      %s18 = sadd.s32 1, %s14
    $region7: #{ngram_forward.1} parent=1 // loop_footer_branch
      %13 = sbr.rel target = $region3
    $region8: #{ngram_forward.1} parent=1 // loop_exit
      _
    %955 = vsyncpa [#allocation3], 1
    %s956 = scalar_lea.sflag [#allocation3], 1
    %957 = vsyncpa %s956, 1

</llo_original>
